<compile_context>
chip_gen: v6e
topology: v6e:2x2x1
jax: 0.10.0
libtpu: 0.0.40
codegen_flags: <defaults>
</compile_context>

<pallas_src>
import functools
import math

import jax
import jax.numpy as jnp
from jax.experimental import pallas as pl
from jax.experimental.pallas import tpu as pltpu


def _round_up(v, m):
    return ((v + m - 1) // m) * m


def _sublane_pack(dtype):
    # Second-minor packing: 8 rows for 32-bit, 16 for bf16, 32 for int8/fp8.
    return max(8, 32 // jnp.dtype(dtype).itemsize)


def _pick_tk(K, max_tk):
    """K tile: full K if it fits one block, else a 128-multiple divisor of K,
    else max_tk with the remainder masked in-kernel (no wrapper-side x pad)."""
    if K <= max_tk:
        return K
    for cand in (max_tk, 512, 384, 256, 128):
        if cand <= max_tk and K % cand == 0:
            return cand
    return max_tk


def _linear_kernel(x_ref, w_ref, b_ref, o_ref, *scratch, af, fuse_softmax,
                   n_valid, k_rem, multi_k):
    """One (i, j, k) grid step of y = x @ W^T + b (+ fused epilogue).

    x_ref: [tm, tk]      activations
    w_ref: [tk, tn]      weight, pre-transposed to [in, out], lane-padded
    b_ref: [1,  tn]      bias (f32)
    o_ref: [tm, n_out]   output tile (n_out == n_valid when the whole row is
                         produced by one N block, else == tn)
    scratch[0] (only when multi_k): [tm, tn] f32 accumulator, resident over k.
    """
    x = x_ref[...]
    w = w_ref[...]

    if k_rem:
        # K is tiled but not a multiple of tk: zero the stale tail of the edge
        # k block (both operands -> exact zero contribution), instead of
        # materializing a padded copy of x in HBM.
        k = pl.program_id(2)
        valid = jnp.where(k == pl.num_programs(2) - 1, k_rem, x.shape[-1])
        x = jnp.where(jax.lax.broadcasted_iota(jnp.int32, x.shape, 1) < valid, x, 0)
        w = jnp.where(jax.lax.broadcasted_iota(jnp.int32, w.shape, 0) < valid, w, 0)

    part = jnp.dot(x, w, preferred_element_type=jnp.float32)

    def _finish(res):
        out = res + b_ref[...].astype(jnp.float32)
        if af == "relu":
            out = jnp.maximum(out, 0.0)
        elif af == "softmax" and fuse_softmax:
            if n_valid != out.shape[-1]:
                # Mask lane padding (cols >= n_valid hold bias=0 logits).
                col = jax.lax.broadcasted_iota(jnp.int32, out.shape, 1)
                out = jnp.where(col < n_valid, out, -jnp.inf)
            m = jnp.max(out, axis=-1, keepdims=True)       # XLU reduce
            e = jnp.exp(out - m)                           # EUP slot
            s = jnp.sum(e, axis=-1, keepdims=True)         # XLU reduce
            out = e / s                                    # exact: rows sum to 1
        # Slice lane padding off in-kernel; rows past M are masked by Pallas on
        # the edge-block store (all epilogue ops are row-wise independent).
        o_ref[...] = out[:, : o_ref.shape[-1]].astype(o_ref.dtype)

    if multi_k:
        acc_ref = scratch[0]
        k = pl.program_id(2)

        @pl.when(k == 0)
        def _():
            acc_ref[...] = jnp.zeros_like(acc_ref)

        acc_ref[...] += part

        @pl.when(k == pl.num_programs(2) - 1)
        def _():
            _finish(acc_ref[...])
    else:
        _finish(part)


def prepare_linear_params(weight, bias, compute_dtype=None):
    """One-time parameter prep (keep OFF the per-call hot path):
      * transpose PyTorch [out, in] -> [in, out] so the kernel runs a plain
        [tm,tk] x [tk,tn] MXU matmul (no transposed contraction in-kernel),
      * zero-pad out_features up to a multiple of 128 (lane-dense tiles),
      * optional cast of the weight to a compute dtype (e.g. bfloat16).
    Returns (w_t_padded [K, N_pad], bias_padded_f32 [1, N_pad], out_features).
    """
    N, K = weight.shape
    N_pad = _round_up(N, 128)
    w = weight.astype(compute_dtype) if compute_dtype is not None else weight
    w = w.T                                   # [K, N]
    b = bias.astype(jnp.float32)
    if N_pad != N:
        w = jnp.pad(w, ((0, 0), (0, N_pad - N)))
        b = jnp.pad(b, ((0, N_pad - N),))
    return w, b.reshape(1, N_pad), N


def my_linear_prepared(x, w_t, b2, out_features, *, af=None, p=None, dim=None,
                       tm=512, tn=512, max_tk=512, compute_dtype=None,
                       vmem_budget=24 << 20):
    """Pallas MyLinear.forward (eval mode) with pre-prepared params.

    x:   [..., in_features]
    w_t: [in_features, N_pad]  (from prepare_linear_params)
    b2:  [1, N_pad] float32
    """
    K, N_pad = w_t.shape
    N = out_features
    if x.shape[-1] != K:
        raise ValueError(
            "[error] putils.Linear(%s, %s): last dimension of input(%s) should "
            "equal to in_features(%s)" % (K, N, x.shape[-1], K))
    # TODO(synk): dropout (p) is identity in eval mode; training-mode dropout not implemented.

    out_dtype = x.dtype
    if compute_dtype is not None:
        x = x.astype(compute_dtype)
    if x.dtype != w_t.dtype:
        x = x.astype(w_t.dtype)          # keep both MXU operands in one dtype

    lead = x.shape[:-1]
    M = math.prod(lead) if lead else 1
    x2 = x.reshape(M, K)

    in_itemsize = jnp.dtype(x2.dtype).itemsize
    out_itemsize = jnp.dtype(out_dtype).itemsize
    sub = _sublane_pack(x2.dtype)

    # --- tiling decisions ---------------------------------------------------
    max_tk = max(128, (max_tk // 128) * 128)
    tk = _pick_tk(K, max_tk)
    kt = pl.cdiv(K, tk)
    multi_k = kt > 1
    k_rem = (K % tk) if multi_k else 0

    tm_eff = min(_round_up(tm, sub), _round_up(M, sub))

    def vmem_est(tm_, tn_):
        return ((2 * tm_ * tk + 2 * tk * tn_ + 2 * tn_) * in_itemsize
                + 2 * tm_ * tn_ * out_itemsize
                + (tm_ * tn_ * 4 if multi_k else 0))

    # Prefer a full-row (weight-resident) N tile: W is not re-streamed per M
    # block and the softmax epilogue stays fusable.
    tn_eff = N_pad
    if vmem_est(tm_eff, tn_eff) > vmem_budget:
        tn_eff = min(N_pad, _round_up(min(tn, N_pad), 128))
    while vmem_est(tm_eff, tn_eff) > vmem_budget and tm_eff > sub:
        tm_eff = _round_up(max(tm_eff // 2, sub), sub)

    gm = pl.cdiv(M, tm_eff)
    gn = pl.cdiv(N_pad, tn_eff)

    # v7x has 2 TensorCores sharded over the parallel grid axes: make sure at
    # least 2 parallel blocks exist when M allows it (no-op on v5e/v6e).
    if gm * gn < 2 and M > sub:
        tm_eff = max(sub, _round_up(pl.cdiv(M, 2), sub))
        gm = pl.cdiv(M, tm_eff)

    grid = (gm, gn, kt)

    fuse_softmax = (af == "softmax" and gn == 1
                    and (dim is None or dim == -1 or dim == x.ndim - 1))
    # TODO(synk): dim=None follows the modern "last dim" default, not F.softmax's
    # deprecated legacy implicit-dim selection.

    n_out_block = N if gn == 1 else tn_eff

    w_reads = 1 if (gn == 1 and not multi_k) else gm
    cost = pl.CostEstimate(
        flops=2 * M * K * N_pad,
        transcendentals=(M * N_pad) if fuse_softmax else 0,
        bytes_accessed=(in_itemsize * (gn * M * K)
                        + in_itemsize * (w_reads * K * N_pad)
                        + 4 * N_pad
                        + out_itemsize * M * N),
    )

    vmem_limit = int(min(64 << 20, max(16 << 20, 2 * vmem_est(tm_eff, tn_eff))))

    scratch = [pltpu.VMEM((tm_eff, tn_eff), jnp.float32)] if multi_k else []

    out = pl.pallas_call(
        functools.partial(_linear_kernel, af=af, fuse_softmax=fuse_softmax,
                          n_valid=N, k_rem=k_rem, multi_k=multi_k),
        out_shape=jax.ShapeDtypeStruct((M, N), out_dtype),
        grid_spec=pltpu.PrefetchScalarGridSpec(
            num_scalar_prefetch=0,
            grid=grid,
            in_specs=[
                pl.BlockSpec((tm_eff, tk), lambda i, j, k: (i, k)),    # x
                pl.BlockSpec((tk, tn_eff), lambda i, j, k: (k, j)),    # W^T [K, N_pad]
                pl.BlockSpec((1, tn_eff), lambda i, j, k: (0, j)),     # bias
            ],
            out_specs=pl.BlockSpec((tm_eff, n_out_block), lambda i, j, k: (i, j)),
            scratch_shapes=scratch,
        ),
        compiler_params=pltpu.CompilerParams(
            dimension_semantics=("parallel", "parallel", "arbitrary"),
            vmem_limit_bytes=vmem_limit,
        ),
        cost_estimate=cost,
    )(x2, w_t, b2)

    y = out.reshape(*lead, N)

    # Activation handling (matching F.<af> in the original module).
    if af is None or af == "relu" or (af == "softmax" and fuse_softmax):
        return y
    if af == "softmax":
        # Not fusable (softmax axis not last, or N tiled) -> apply outside.
        return jax.nn.softmax(y, axis=(dim if dim is not None else -1))
    fn = getattr(jax.nn, af, None) or getattr(jnp, af, None)
    if fn is None:
        raise NotImplementedError("activation '%s' not supported" % af)
    # TODO(synk): activation applied outside the kernel (not fused).
    return fn(y)


def my_linear(x, weight, bias, *, af=None, p=None, dim=None,
              compute_dtype=None, **kw):
    """Convenience wrapper taking raw PyTorch-layout params.
    NOTE: pads/transposes the weight per call; for the hot path call
    prepare_linear_params once and reuse my_linear_prepared."""
    w_t, b2, n = prepare_linear_params(weight, bias, compute_dtype=compute_dtype)
    return my_linear_prepared(x, w_t, b2, n, af=af, p=p, dim=dim,
                              compute_dtype=compute_dtype, **kw)


def init_linear_params(key, in_features, out_features, dtype=jnp.float32):
    """Deterministic init mimicking nn.Linear (uniform(-1/sqrt(fan_in), +))."""
    kw, kb = jax.random.split(key)
    bound = 1.0 / (in_features ** 0.5)
    weight = jax.random.uniform(
        kw, (out_features, in_features), dtype=dtype, minval=-bound, maxval=bound)
    bias = jax.random.uniform(
        kb, (out_features,), dtype=dtype, minval=-bound, maxval=bound)
    return weight, bias


if __name__ == "__main__":
    key = jax.random.PRNGKey(0)
    ks = jax.random.split(key, 8)

    # --- Case 1: plain linear, small module-like shapes (batch=2, seq=8, 32->64) ---
    x = jax.random.normal(ks[0], (2, 8, 32), dtype=jnp.float32)
    w, b = init_linear_params(ks[1], 32, 64)
    wp, bp, n = prepare_linear_params(w, b)        # one-time prep (off hot path)
    y = jax.block_until_ready(my_linear_prepared(x, wp, bp, n, af=None, p=None))
    y_ref = x @ w.T + b
    assert y.shape == (2, 8, 64)
    assert jnp.allclose(y, y_ref, atol=1e-5, rtol=1e-5), "case1"

    # --- Case 2: relu, K tiled (kt=2), ragged N (200), M edge blocks -------------
    x2 = jax.random.normal(ks[2], (4, 75, 1024), dtype=jnp.float32)   # M=300, K=1024
    w2, b2 = init_linear_params(ks[3], 1024, 200)                     # N=200 -> pad 256
    y2 = jax.block_until_ready(my_linear(x2, w2, b2, af="relu"))
    y2_ref = jnp.maximum(x2 @ w2.T + b2, 0.0)
    assert y2.shape == (4, 75, 200)
    assert jnp.allclose(y2, y2_ref, atol=1e-4, rtol=1e-4), "case2"

    # --- Case 3: fused softmax epilogue over the last dim -----------------------
    y3 = jax.block_until_ready(my_linear_prepared(x, wp, bp, n, af="softmax", dim=-1))
    y3_ref = jax.nn.softmax(x @ w.T + b, axis=-1)
    assert jnp.allclose(y3, y3_ref, atol=1e-4, rtol=1e-4), "case3"

    # --- Case 4: K not a multiple of the K tile -> in-kernel remainder masking ---
    x4 = jax.random.normal(ks[4], (2, 50, 1216), dtype=jnp.float32)   # K=1216, rem=192
    w4, b4 = init_linear_params(ks[5], 1216, 96)
    y4 = jax.block_until_ready(my_linear(x4, w4, b4))
    y4_ref = x4 @ w4.T + b4
    assert y4.shape == (2, 50, 96)
    assert jnp.allclose(y4, y4_ref, atol=1e-4, rtol=1e-4), "case4"

    # --- Case 5: bf16 compute path (f32 in/out, bf16 MXU operands, f32 acc) ------
    x5 = jax.random.normal(ks[6], (2, 64, 256), dtype=jnp.float32)
    w5, b5 = init_linear_params(ks[7], 256, 384)
    y5 = jax.block_until_ready(my_linear(x5, w5, b5, compute_dtype=jnp.bfloat16))
    y5_ref = x5 @ w5.T + b5
    assert y5.dtype == jnp.float32 and y5.shape == (2, 64, 384)
    assert jnp.allclose(y5, y5_ref, atol=5e-2, rtol=5e-2), "case5"

    print("KERNEL_OK")
</pallas_src>

<mosaic_0001>
module attributes {stable_mosaic.version = 11 : i64} {
  func.func @_linear_kernel(%arg0: i32, %arg1: i32, %arg2: i32, %arg3: memref<8x32xf32, #tpu.memory_space<vmem>>, %arg4: memref<32x128xf32, #tpu.memory_space<vmem>>, %arg5: memref<1x128xf32, #tpu.memory_space<vmem>>, %arg6: memref<8x64xf32, #tpu.memory_space<vmem>>) attributes {dimension_semantics = [#tpu.dimension_semantics<parallel>, #tpu.dimension_semantics<parallel>, #tpu.dimension_semantics<arbitrary>], iteration_bounds = array<i64: 2, 1, 1>, scalar_prefetch = 0 : i64, scratch_operands = 0 : i64, tpu.core_type = #tpu.core_type<tc>, window_params = [{transform_indices = @transform_0, window_bounds = array<i64: 8, 32>}, {transform_indices = @transform_1, window_bounds = array<i64: 32, 128>}, {transform_indices = @transform_2, window_bounds = array<i64: 1, 128>}, {transform_indices = @transform_3, window_bounds = array<i64: 8, 64>}]} {
    %c0 = arith.constant 0 : index
    %c0_0 = arith.constant 0 : index
    %0 = vector.load %arg3[%c0, %c0_0] : memref<8x32xf32, #tpu.memory_space<vmem>>, vector<8x32xf32>
    %c0_1 = arith.constant 0 : index
    %c0_2 = arith.constant 0 : index
    %1 = vector.load %arg4[%c0_1, %c0_2] : memref<32x128xf32, #tpu.memory_space<vmem>>, vector<32x128xf32>
    %cst = arith.constant dense<0.000000e+00> : vector<8x128xf32>
    %2 = tpu.matmul %0, %1, %cst {dimension_numbers = #tpu.dot_dimension_numbers<[1], [0], [0], [1], [0, 0, 1, 1], [], []>} : vector<8x32xf32>, vector<32x128xf32>, vector<8x128xf32> -> vector<8x128xf32>
    %c0_3 = arith.constant 0 : index
    %c0_4 = arith.constant 0 : index
    %3 = vector.load %arg5[%c0_3, %c0_4] : memref<1x128xf32, #tpu.memory_space<vmem>>, vector<1x128xf32>
    %4 = vector.broadcast %3 : vector<1x128xf32> to vector<8x128xf32>
    %5 = arith.addf %2, %4 : vector<8x128xf32>
    %6 = vector.extract_strided_slice %5 {offsets = [0, 0], sizes = [8, 64], strides = [1, 1]} : vector<8x128xf32> to vector<8x64xf32>
    %c0_5 = arith.constant 0 : index
    %c0_6 = arith.constant 0 : index
    %7 = vector.load %arg6[%c0_5, %c0_6] : memref<8x64xf32, #tpu.memory_space<vmem>>, vector<8x64xf32>
    tpu.vector_store %arg6[%c0_5, %c0_6], %6 {strides = array<i32>} : memref<8x64xf32, #tpu.memory_space<vmem>>, vector<8x64xf32>,
    return
  }
  func.func @transform_0(%arg0: i32, %arg1: i32, %arg2: i32) -> (i32, i32) {
    %c0_i32 = arith.constant 0 : i32
    return %arg0, %arg2 : i32, i32
  }
  func.func @transform_1(%arg0: i32, %arg1: i32, %arg2: i32) -> (i32, i32) {
    %c0_i32 = arith.constant 0 : i32
    return %arg2, %arg1 : i32, i32
  }
  func.func @transform_2(%arg0: i32, %arg1: i32, %arg2: i32) -> (i32, i32) {
    %c0_i32 = arith.constant 0 : i32
    %c0_i32_0 = arith.constant 0 : i32
    return %c0_i32, %arg1 : i32, i32
  }
  func.func @transform_3(%arg0: i32, %arg1: i32, %arg2: i32) -> (i32, i32) {
    %c0_i32 = arith.constant 0 : i32
    return %arg0, %arg1 : i32, i32
  }
}

</mosaic_0001>

<llo_original>
// kernel: tpu_custom_call.1
$region0: #{tpu_custom_call.1}
  #allocation0 [shape = 'u32[]', space=smem, size = 0x4, offset = 0x4, fixed_abs, tag = 'smem constant byte address 0x4 - core index']
  #allocation1 [shape = 'u32[144,128]{1,0:T(1,128)}', space=vmem, size = 0x12000, scoped, tag = 'internal scratch']
  %s0 = inlined_call_operand.hbm [shape: f32[16,32], index: 0, kind: input, shape index: {}]
  %s1 = inlined_call_operand.hbm [shape: f32[32,128], index: 1, kind: input, shape index: {}]
  %s2 = inlined_call_operand.vmem [shape: f32[1,128], index: 2, kind: input, shape index: {}]
  %s3 = inlined_call_operand.hbm [shape: f32[16,64], index: 3, kind: output, shape index: {}]
  %s4 = sld [smem:[#allocation0]]
  $region53: #{tpu_custom_call.1} parent=0
    _
  %s6 = ssub.s32 1, %s4
  %s7 = scalar_select 0, %s6, %s4
  $region1: #{tpu_custom_call.1} parent=0
    #allocation2 [shape = 'u8[8192]{0}', space=vmem, size = 0x2000, scoped, tag = 'input window, operand 0']
    #allocation3 [shape = 's32[2]{0}', space=sflag, size = 0x8, scoped, tag = 'scoped memory for tpu_custom_call.1']
    #allocation4 [shape = 's32[2]{0}', space=sflag, size = 0x8, scoped, tag = 'scoped memory for tpu_custom_call.1']
    #allocation5 [shape = 'u8[16384]{0}', space=vmem, size = 0x4000, scoped, tag = 'input window, operand 1, single buffered']
    #allocation6 [shape = 's32[1]{0}', space=sflag, size = 0x4, scoped, tag = 'scoped memory for tpu_custom_call.1']
    #allocation7 [shape = 'u8[8192]{0}', space=vmem, size = 0x2000, scoped, tag = 'output window, operand 0']
    %8 = vsyncpa [#allocation3], 0
    %s9 = scalar_lea.sflag [#allocation3], 1
    %10 = vsyncpa %s9, 0
    %11 = vsyncpa [#allocation6], 0
    %12 = vsyncpa [#allocation4], 0
    %s13 = scalar_lea.sflag [#allocation4], 1
    %14 = vsyncpa %s13, 0
    loop: start=0, step=1, limit=4
    $region2: #{tpu_custom_call.1} parent=1 // loop_pre_header
      _
    $region3: #{tpu_custom_call.1} parent=1 // loop_header
      %s16 = sphi 0, %s20
      %p17 = scmp.ge.s32.totalorder %s16, 4
      %s23 = sphi 0, %s42
      %s24 = sphi 0, %s38
      %s25 = sphi 0, %s34
      %s26 = sphi 0, %s23
      %s27 = sphi 0, %s24
      %s28 = sphi 0, %s25
      %s29 = sphi 0, %s26
      %s30 = sphi 0, %s27
      %s31 = sphi 0, %s28
      %s47 = sphi 0, %s49
      %s50 = sphi 0, %s47
      %s51 = sphi 0, %s50
      %s67 = sphi 0, %s51
      %s75 = sphi 0, %s77
      %s78 = sphi 0, %s75
      %s79 = sphi 0, %s78
      %s95 = sphi 0, %s79
      %s101 = sphi 0, %s103
      %s104 = sphi 0, %s101
      %s105 = sphi 0, %s104
      %s121 = sphi 0, %s105
      %s129 = sphi 0, %s131
      %s132 = sphi 0, %s129
      %s133 = sphi 0, %s132
      %s149 = sphi 0, %s133
    $region4: #{tpu_custom_call.1} parent=1 // loop_header_branch
      %19 = sbr.rel (%p17) target = $region8
    $region5: #{tpu_custom_call.1} parent=1 // loop_body
      %s21 = ssub.s32 %s16, 1
      %s22 = ssub.s32 %s16, 2
      %s32 = sadd.s32 1, %s25
      %p33 = scmp.ge.s32.totalorder %s32, 1
      %s34 = scalar_select %p33, 0, %s32
      %s35 = sadd.s32 1, %s24
      %s36 = scalar_select %p33, %s35, %s24
      %p37 = scmp.ge.s32.totalorder %s36, 1
      %s38 = scalar_select %p37, 0, %s36
      %s39 = sadd.s32 1, %s23
      %s40 = scalar_select %p37, %s39, %s23
      %p41 = scmp.ge.s32.totalorder %s40, 2
      %s42 = scalar_select %p41, 0, %s40
      %s43 = ssub.s32 %s23, %s42
      %s44 = ssub.s32 %s25, %s34
      %s45 = sor.u32 %s43, %s44
      %p46 = scmp.eq.s32.totalorder %s45, 0
      %s48 = sadd.s32 %s47, 1
      %s49 = scalar_select %p46, %s47, %s48
      %p52 = pneg %p46
      %p53 = scmp.eq.s32.totalorder %s16, 1
      %p54 = por %p52, %p53
      %p55 = scmp.ne.s32.totalorder %s47, %s50
      %p56 = scmp.eq.s32.totalorder %s16, 0
      %p57 = por %p55, %p56
      %p58 = scmp.ne.s32.totalorder %s47, %s50
      %p59 = scmp.eq.s32.totalorder %s21, 1
      %p60 = por %p58, %p59
      %p61 = scmp.ne.s32.totalorder %s50, %s51
      %p62 = scmp.eq.s32.totalorder %s21, 0
      %p63 = por %p61, %p62
      %p64 = scmp.ne.s32.totalorder %s50, %s51
      %p65 = scmp.eq.s32.totalorder %s22, 1
      %p66 = por %p64, %p65
      %p68 = scmp.ne.s32.totalorder %s51, %s67
      %p69 = scmp.eq.s32.totalorder %s22, 0
      %p70 = por %p68, %p69
      %s71 = ssub.s32 %s25, %s34
      %s72 = ssub.s32 %s24, %s38
      %s73 = sor.u32 %s71, %s72
      %p74 = scmp.eq.s32.totalorder %s73, 0
      %s76 = sadd.s32 %s75, 1
      %s77 = scalar_select %p74, %s75, %s76
      %p80 = pneg %p74
      %p81 = scmp.eq.s32.totalorder %s16, 1
      %p82 = por %p80, %p81
      %p83 = scmp.ne.s32.totalorder %s75, %s78
      %p84 = scmp.eq.s32.totalorder %s16, 0
      %p85 = por %p83, %p84
      %p86 = scmp.ne.s32.totalorder %s75, %s78
      %p87 = scmp.eq.s32.totalorder %s21, 1
      %p88 = por %p86, %p87
      %p89 = scmp.ne.s32.totalorder %s78, %s79
      %p90 = scmp.eq.s32.totalorder %s21, 0
      %p91 = por %p89, %p90
      %p92 = scmp.ne.s32.totalorder %s78, %s79
      %p93 = scmp.eq.s32.totalorder %s22, 1
      %p94 = por %p92, %p93
      %p96 = scmp.ne.s32.totalorder %s79, %s95
      %p97 = scmp.eq.s32.totalorder %s22, 0
      %p98 = por %p96, %p97
      %s99 = ssub.s32 %s24, %s38
      %p100 = scmp.eq.s32.totalorder %s99, 0
      %s102 = sadd.s32 %s101, 1
      %s103 = scalar_select %p100, %s101, %s102
      %p106 = pneg %p100
      %p107 = scmp.eq.s32.totalorder %s16, 1
      %p108 = por %p106, %p107
      %p109 = scmp.ne.s32.totalorder %s101, %s104
      %p110 = scmp.eq.s32.totalorder %s16, 0
      %p111 = por %p109, %p110
      %p112 = scmp.ne.s32.totalorder %s101, %s104
      %p113 = scmp.eq.s32.totalorder %s21, 1
      %p114 = por %p112, %p113
      %p115 = scmp.ne.s32.totalorder %s104, %s105
      %p116 = scmp.eq.s32.totalorder %s21, 0
      %p117 = por %p115, %p116
      %p118 = scmp.ne.s32.totalorder %s104, %s105
      %p119 = scmp.eq.s32.totalorder %s22, 1
      %p120 = por %p118, %p119
      %p122 = scmp.ne.s32.totalorder %s105, %s121
      %p123 = scmp.eq.s32.totalorder %s22, 0
      %p124 = por %p122, %p123
      %s125 = ssub.s32 %s23, %s42
      %s126 = ssub.s32 %s24, %s38
      %s127 = sor.u32 %s125, %s126
      %p128 = scmp.eq.s32.totalorder %s127, 0
      %s130 = sadd.s32 %s129, 1
      %s131 = scalar_select %p128, %s129, %s130
      %p134 = pneg %p128
      %p135 = scmp.eq.s32.totalorder %s16, 1
      %p136 = por %p134, %p135
      %p137 = scmp.ne.s32.totalorder %s129, %s132
      %p138 = scmp.eq.s32.totalorder %s16, 0
      %p139 = por %p137, %p138
      %p140 = scmp.ne.s32.totalorder %s129, %s132
      %p141 = scmp.eq.s32.totalorder %s21, 1
      %p142 = por %p140, %p141
      %p143 = scmp.ne.s32.totalorder %s132, %s133
      %p144 = scmp.eq.s32.totalorder %s21, 0
      %p145 = por %p143, %p144
      %p146 = scmp.ne.s32.totalorder %s132, %s133
      %p147 = scmp.eq.s32.totalorder %s22, 1
      %p148 = por %p146, %p147
      %p150 = scmp.ne.s32.totalorder %s133, %s149
      %p151 = scmp.eq.s32.totalorder %s22, 0
      %p152 = por %p150, %p151
      %p153 = scmp.le.s32.totalorder 1, %s16
      %p154 = scmp.lt.s32.totalorder %s16, 3
      %p155 = pnand %p153, %p154
      %p156 = pneg %p155
      // Predicated region
      $region9: #{tpu_custom_call.1} parent=5 // pred_check
        _
      $region10: #{tpu_custom_call.1} parent=5 // pred_check_branch
        %158 = sbr.rel (%p155) target = $region12
      $region11: #{tpu_custom_call.1} parent=5 // pred_region
        %s159 = ssub.s32 %s16, 1
        // Predicated region
        $region13: #{tpu_custom_call.1} parent=11 // pred_check
          %p160 = pneg %p91
        $region14: #{tpu_custom_call.1} parent=11 // pred_check_branch
          %162 = sbr.rel (%p160) target = $region16
        $region15: #{tpu_custom_call.1} parent=11 // pred_region
          %s163 = smul.u32 4, %s28
          %s165 = ssub.s32 512, 512
          %166 = vsyncadd [#allocation6], %s165
          %s167 = sadd.s32 %s27, %s163
          %s168 = smul.addr %s167, 128
          %s169 = scalar_lea.hbm %s1, %s168
          %s170 = sshll.u32 [#allocation5], 4
          %s171 = int_to_ptr.vmem [resolvable:$true] %s170
          %176 = dma.hbm_to_vmem [thread:$0]  %s169, 512, %s171, [#allocation6], 128, 128, 8
        $region16: #{tpu_custom_call.1} parent=11 // pred_fallthru
          _
        // Predicated region
        $region17: #{tpu_custom_call.1} parent=11 // pred_check
          %p177 = pneg %p117
        $region18: #{tpu_custom_call.1} parent=11 // pred_check_branch
          %179 = sbr.rel (%p177) target = $region20
        $region19: #{tpu_custom_call.1} parent=11 // pred_region
          %p180 = scmp.lt.s32.totalorder %s27, 0
          %s181 = scalar_select %p180, %s27, 0
          %s182 = scalar_lea.vmem %s2, %s181
        $region20: #{tpu_custom_call.1} parent=11 // pred_fallthru
          _
      $region12: #{tpu_custom_call.1} parent=5 // pred_fallthru
        _
      %p183 = scmp.lt.s32.totalorder %s16, 2
      // Predicated region
      $region21: #{tpu_custom_call.1} parent=5 // pred_check
        %p184 = pneg %p183
      $region22: #{tpu_custom_call.1} parent=5 // pred_check_branch
        %186 = sbr.rel (%p184) target = $region24
      $region23: #{tpu_custom_call.1} parent=5 // pred_region
        // Predicated region
        $region25: #{tpu_custom_call.1} parent=23 // pred_check
          %p187 = pneg %p57
        $region26: #{tpu_custom_call.1} parent=23 // pred_check_branch
          %189 = sbr.rel (%p187) target = $region28
        $region27: #{tpu_custom_call.1} parent=23 // pred_region
          %s190 = sand.u32 %s47, 1
          %s191 = scalar_lea.sflag [#allocation3], %s190
          %s192 = sand.u32 %s47, 1
          %s193 = smul.addr %s192, 8
          %s194 = scalar_lea.vmem [#allocation2], %s193
          %s196 = ssub.s32 128, 128
          %197 = vsyncadd %s191, %s196
          %s198 = sadd.s32 %s25, %s23
          %s199 = smul.addr %s198, 128
          %s200 = scalar_lea.hbm %s0, %s199
          %s202 = sshll.u32 %s194, 4
          %s203 = int_to_ptr.vmem [resolvable:$true] %s202
          %205 = dma.hbm_to_vmem [thread:$0]  %s200, 128, %s203, %s191
        $region28: #{tpu_custom_call.1} parent=23 // pred_fallthru
          _
      $region24: #{tpu_custom_call.1} parent=5 // pred_fallthru
        _
      %p206 = scmp.le.s32.totalorder 1, %s16
      %p207 = scmp.lt.s32.totalorder %s16, 3
      %p208 = pnand %p206, %p207
      %p209 = pneg %p208
      // Predicated region
      $region29: #{tpu_custom_call.1} parent=5 // pred_check
        _
      $region30: #{tpu_custom_call.1} parent=5 // pred_check_branch
        %211 = sbr.rel (%p208) target = $region32
      $region31: #{tpu_custom_call.1} parent=5 // pred_region
        %s212 = ssub.s32 %s16, 1
        %s213 = sand.u32 %s50, 1
        %s214 = scalar_lea.sflag [#allocation3], %s213
        %s215 = sand.u32 %s50, 1
        %s216 = smul.addr %s215, 8
        %s217 = scalar_lea.vmem [#allocation2], %s216
        // Predicated region
        $region33: #{tpu_custom_call.1} parent=31 // pred_check
          %p218 = pneg %p63
        $region34: #{tpu_custom_call.1} parent=31 // pred_check_branch
          %220 = sbr.rel (%p218) target = $region36
        $region35: #{tpu_custom_call.1} parent=31 // pred_region
          %221 = dma.done %s214, 128
        $region36: #{tpu_custom_call.1} parent=31 // pred_fallthru
          _
        // Predicated region
        $region37: #{tpu_custom_call.1} parent=31 // pred_check
          %p222 = pneg %p91
        $region38: #{tpu_custom_call.1} parent=31 // pred_check_branch
          %224 = sbr.rel (%p222) target = $region40
        $region39: #{tpu_custom_call.1} parent=31 // pred_region
          %225 = dma.done [#allocation6], 512
        $region40: #{tpu_custom_call.1} parent=31 // pred_fallthru
          _
        %s226 = sand.u32 %s50, 1
        %s227 = scalar_lea.sflag [#allocation3], %s226
        %s228 = sand.u32 %s50, 1
        %s229 = smul.addr %s228, 8
        %s230 = scalar_lea.vmem [#allocation2], %s229
        %p231 = pneg %p63
        %p232 = pneg %p60
        %p233 = pneg %p91
        %p234 = pneg %p88
        %p235 = scmp.lt.s32.totalorder %s27, 0
        %s236 = scalar_select %p235, %s27, 0
        %s237 = scalar_lea.vmem %s2, %s236
        %p238 = pneg %p117
        %p239 = pneg %p114
        %p240 = pneg %p145
        %p241 = pneg %p142
        %s242 = sand.u32 %s132, 1
        %s243 = scalar_lea.sflag [#allocation4], %s242
        %s244 = sand.u32 %s132, 1
        %s245 = smul.addr %s244, 8
        %s246 = scalar_lea.vmem [#allocation7], %s245
        %s247 = smul.u32 4, %s28
        %p248 = scmp.lt.s32.totalorder %s27, 0
        %s249 = scalar_select %p248, %s27, 0
        %s250 = scalar_lea.vmem %s2, %s249
        %v251 = vld [vmem:[%s217] sm:$0xff]
        %v252 = vld [vmem:[#allocation5] sm:$0xff]
        %v253 = vld [vmem:[#allocation5 + $0x8] sm:$0xff]
        %v254 = vld [vmem:[#allocation5 + $0x10] sm:$0xff]
        %v255 = vld [vmem:[#allocation5 + $0x18] sm:$0xff]
        %v256 = vld [vmem:[%s250] sm:$0x1]
        %v258 = vlaneseq
        %v259 = vshrl.u32 %v258, 7
        %v260 = vsub.s32 0, %v259
        %v261 = vrot.slane %v256, %v260
        %vm263 = vcmask 261120
        %v265 = vsel %vm263, %v251, 0
        %267 = vmatprep.subr.mxu0 0.0
        %268 = vmatpush1.msra.mxu0 0.0
        %269 = vmatprep.subr.mxu0 0.0
        %270 = vmatpush1.msra.mxu0 0.0
        %271 = vmatprep.subr.mxu0 0.0
        %272 = vmatpush1.msra.mxu0 0.0
        %273 = vmatprep.subr.mxu0 0.0
        %274 = vmatpush1.msra.mxu0 0.0
        %275 = vmatprep.subr.mxu0 0.0
        %276 = vmatpush1.msra.mxu0 0.0
        %277 = vmatprep.subr.mxu0 0.0
        %278 = vmatpush1.msra.mxu0 0.0
        %279 = vmatprep.subr.mxu0 0.0
        %280 = vmatpush1.msra.mxu0 0.0
        %281 = vmatprep.subr.mxu0 0.0
        %282 = vmatpush1.msra.mxu0 0.0
        %283 = vmatprep.subr.mxu0 0.0
        %284 = vmatpush1.msra.mxu0 0.0
        %285 = vmatprep.subr.mxu0 0.0
        %286 = vmatpush1.msra.mxu0 0.0
        %287 = vmatprep.subr.mxu0 0.0
        %288 = vmatpush1.msra.mxu0 0.0
        %289 = vmatprep.subr.mxu0 0.0
        %290 = vmatpush1.msra.mxu0 0.0
        %291 = vmatprep.subr.mxu0 0.0
        %292 = vmatpush1.msra.mxu0 %v255
        %293 = vmatprep.subr.mxu0 0.0
        %294 = vmatpush1.msra.mxu0 %v254
        %295 = vmatprep.subr.mxu0 0.0
        %296 = vmatpush1.msra.mxu0 %v253
        %297 = vmatprep.subr.mxu0 0.0
        %298 = vmatpush1.msra.mxu0 %v252
        %299 = vmatprep.subr.mxu0 0.0
        %300 = vmatpush2.msra.mxu0 0.0
        %301 = vmatprep.subr.mxu0 0.0
        %302 = vmatpush2.msra.mxu0 0.0
        %303 = vmatprep.subr.mxu0 0.0
        %304 = vmatpush2.msra.mxu0 0.0
        %305 = vmatprep.subr.mxu0 0.0
        %306 = vmatpush2.msra.mxu0 0.0
        %307 = vmatprep.subr.mxu0 0.0
        %308 = vmatpush2.msra.mxu0 0.0
        %309 = vmatprep.subr.mxu0 0.0
        %310 = vmatpush2.msra.mxu0 0.0
        %311 = vmatprep.subr.mxu0 0.0
        %312 = vmatpush2.msra.mxu0 0.0
        %313 = vmatprep.subr.mxu0 0.0
        %314 = vmatpush2.msra.mxu0 0.0
        %315 = vmatprep.subr.mxu0 0.0
        %316 = vmatpush2.msra.mxu0 0.0
        %317 = vmatprep.subr.mxu0 0.0
        %318 = vmatpush2.msra.mxu0 0.0
        %319 = vmatprep.subr.mxu0 0.0
        %320 = vmatpush2.msra.mxu0 0.0
        %321 = vmatprep.subr.mxu0 0.0
        %322 = vmatpush2.msra.mxu0 0.0
        %323 = vmatprep.subr.mxu0 0.0
        %324 = vmatpush2.msra.mxu0 0.0
        %325 = vmatprep.subr.mxu0 0.0
        %326 = vmatpush2.msra.mxu0 0.0
        %327 = vmatprep.subr.mxu0 0.0
        %328 = vmatpush2.msra.mxu0 0.0
        %329 = vmatprep.subr.mxu0 0.0
        %330 = vmatpush2.msra.mxu0 0.0
        %331 = vmatprep.mubr.f32.mxu0 0.0
        %332 = vmatmul.mubr.f32.gmra.mxu0 %v265
        %v333 = vpop.f32.mrf.mxu0
        %v334 = vadd.f32 %v261, %v333
        %v335 = vpop.f32.mrf.mxu0
        %336 = vdwg.mxu0
        %vm337 = vcmask 523264
        %338 = vst.msk [vmem:[%s246] sm:$0xff] %vm337, %v334
        %s339 = sand.u32 %s132, 1
        %s340 = scalar_lea.sflag [#allocation4], %s339
        %s341 = sand.u32 %s132, 1
        %s342 = smul.addr %s341, 8
        %s343 = scalar_lea.vmem [#allocation7], %s342
        // Predicated region
        $region41: #{tpu_custom_call.1} parent=31 // pred_check
          %p344 = pneg %p142
        $region42: #{tpu_custom_call.1} parent=31 // pred_check_branch
          %346 = sbr.rel (%p344) target = $region44
        $region43: #{tpu_custom_call.1} parent=31 // pred_region
          %s348 = ssub.s32 128, 128
          %349 = vsyncadd %s340, %s348
          %s350 = sadd.s32 %s27, %s26
          %s351 = smul.addr %s350, 128
          %s352 = scalar_lea.hbm %s3, %s351
          %s354 = sshll.u32 %s343, 4
          %s355 = int_to_ptr.vmem [resolvable:$true] %s354
          %357 = dma.vmem_to_hbm [thread:$0]  %s355, 128, %s352, %s340
        $region44: #{tpu_custom_call.1} parent=31 // pred_fallthru
          _
      $region32: #{tpu_custom_call.1} parent=5 // pred_fallthru
        _
      %p358 = scmp.le.s32.totalorder 2, %s16
      // Predicated region
      $region45: #{tpu_custom_call.1} parent=5 // pred_check
        %p359 = pneg %p358
      $region46: #{tpu_custom_call.1} parent=5 // pred_check_branch
        %361 = sbr.rel (%p359) target = $region48
      $region47: #{tpu_custom_call.1} parent=5 // pred_region
        %s362 = ssub.s32 %s16, 2
        // Predicated region
        $region49: #{tpu_custom_call.1} parent=47 // pred_check
          %p363 = pneg %p148
        $region50: #{tpu_custom_call.1} parent=47 // pred_check_branch
          %365 = sbr.rel (%p363) target = $region52
        $region51: #{tpu_custom_call.1} parent=47 // pred_region
          %s366 = sand.u32 %s133, 1
          %s367 = scalar_lea.sflag [#allocation4], %s366
          %s368 = sand.u32 %s133, 1
          %s369 = smul.addr %s368, 8
          %s370 = scalar_lea.vmem [#allocation7], %s369
          %371 = dma.done %s367, 128
        $region52: #{tpu_custom_call.1} parent=47 // pred_fallthru
          _
      $region48: #{tpu_custom_call.1} parent=5 // pred_fallthru
        _
    $region6: #{tpu_custom_call.1} parent=1 // loop_footer
      %s20 = sadd.s32 1, %s16
    $region7: #{tpu_custom_call.1} parent=1 // loop_footer_branch
      %15 = sbr.rel target = $region3
    $region8: #{tpu_custom_call.1} parent=1 // loop_exit
      _
    %372 = vsyncpa [#allocation3], 1
    %s373 = scalar_lea.sflag [#allocation3], 1
    %374 = vsyncpa %s373, 1
    %375 = vsyncpa [#allocation6], 1
    %376 = vsyncpa [#allocation4], 1
    %s377 = scalar_lea.sflag [#allocation4], 1
    %378 = vsyncpa %s377, 1

</llo_original>
